<compile_context>
chip_gen: v6e
topology: v6e:2x2x1
jax: 0.10.0
libtpu: 0.0.40
codegen_flags: <defaults>
</compile_context>

<pallas_src>
import functools
import math

import jax
import jax.numpy as jnp
from jax import lax
from jax.experimental import pallas as pl
from jax.experimental.pallas import tpu as pltpu


# ---------------------------------------------------------------------------
# Kernel: one (row_block, band_w) x (band_w, n_tile) matmul per grid step.
# ---------------------------------------------------------------------------
def _banded_matmul_kernel(x_ref, w_ref, o_ref, *, activation, negative_slope):
    """x_ref: (1, row_block, band_w)  windowed input rows (band on lanes)
       w_ref: (1, band_w, n_tile)     operator band slab for this output tile
       o_ref: (row_block, n_tile)     lane-dense output tile
    """
    h = jnp.dot(x_ref[0], w_ref[0], preferred_element_type=jnp.float32)
    if activation == "LeakyReLU":
        h = jnp.where(h >= 0, h, negative_slope * h)
    elif activation == "ReLU":
        h = jnp.maximum(h, 0.0)
    o_ref[...] = h.astype(o_ref.dtype)


# ---------------------------------------------------------------------------
# Band-wise operator construction (no dense (t_out, t_out) intermediates).
# ---------------------------------------------------------------------------
def _round_up(x, m):
    return (x + m - 1) // m * m


def _divisors(n):
    return [d for d in range(1, n + 1) if n % d == 0]


def _layer_band(t_out, scale, taps):
    """Band form of one (nearest-upsample(scale) o zero-padded conv(taps)) layer.

    Returns band (3, t_out) with  y[t] = sum_d band[d+1, t] * x[t//scale + d].
    Entries are exactly 0 whenever the source index is out of range (zero padding baked in).
    `taps` has length 2*scale+1 in PyTorch cross-correlation order.
    """
    t = jnp.arange(t_out)
    k = jnp.arange(2 * scale + 1)
    j = t[None, :] + k[:, None] - scale                              # (K, t_out) upsampled index
    valid = (j >= 0) & (j < t_out)
    d = jnp.where(valid, j // scale - t[None, :] // scale, 0)        # in {-1, 0, +1}
    w = jnp.where(valid, taps[:, None], 0.0)
    band = jnp.zeros((3, t_out), jnp.float32)
    band = band.at[d + 1, jnp.broadcast_to(t[None, :], d.shape)].add(w)
    return band


def _compose_with_band(m_prev, band, scale):
    """(T0, t_in) operator  o  banded layer  ->  (T0, t_out) operator, band-wise."""
    t_out = band.shape[1]
    t_in = m_prev.shape[1]
    base = jnp.arange(t_out) // scale
    out = jnp.zeros((m_prev.shape[0], t_out), jnp.float32)
    for d in (-1, 0, 1):
        idx = base + d
        ok = (idx >= 0) & (idx < t_in)
        cols = jnp.where(ok, idx, 0)
        out = out + jnp.take(m_prev, cols, axis=1) * jnp.where(ok, band[d + 1], 0.0)[None, :]
    return out


# ---------------------------------------------------------------------------
# VMEM-budget-aware tile selection.
# ---------------------------------------------------------------------------
_VMEM_STEP_BUDGET = 24 * 1024 * 1024     # double-buffered per-step bytes target
_MAX_LANE_TILE = 2048                    # target output-tile width (lanes)
_MAX_ROW_BLOCK = 512


def _select_time_tile(t_in, scale_prod, radius, in_bytes, out_bytes):
    """Largest divisor of t_in whose output tile (t_tile*scale_prod) is lane-dense and keeps
    per-step VMEM (input window + slab + output, double buffered) within budget."""
    t_out = t_in * scale_prod
    for cand in sorted(_divisors(t_in), reverse=True):
        n_tile = cand * scale_prod
        lane_ok = (n_tile % 128 == 0) or (n_tile == t_out)
        if not lane_ok or n_tile > max(_MAX_LANE_TILE, 128):
            continue
        band_w = _round_up(cand + 2 * radius, 8)
        step = 2 * (256 * band_w * in_bytes + band_w * n_tile * in_bytes
                    + 256 * n_tile * out_bytes)
        if step <= _VMEM_STEP_BUDGET:
            return cand
    return t_in        # fallback: single full-width tile (always legal/correct)


def _select_row_block(rows_pad, nj, band_w, n_tile, in_bytes, out_bytes):
    def step_bytes(rb):
        return 2 * (rb * band_w * in_bytes + band_w * n_tile * in_bytes
                    + rb * n_tile * out_bytes)

    cands = [d for d in range(8, rows_pad + 1, 8)
             if rows_pad % d == 0 and d <= _MAX_ROW_BLOCK]
    if not cands:
        cands = [rows_pad]
    fitting = [d for d in cands if step_bytes(d) <= _VMEM_STEP_BUDGET]
    rb = max(fitting) if fitting else min(cands)
    # v7x megacore: make sure there are >= 2 "parallel" grid steps when possible.
    if nj * (rows_pad // rb) < 2:
        halves = [d for d in cands if rows_pad // d >= 2]
        if halves:
            h_fit = [d for d in halves if step_bytes(d) <= _VMEM_STEP_BUDGET]
            rb = max(h_fit) if h_fit else max(halves)
    return rb


# ---------------------------------------------------------------------------
# One banded matmul pass (upsample-by-scale_prod linear map with band radius).
# ---------------------------------------------------------------------------
def _banded_pass(x2d, op, scale_prod, radius, *, activation, negative_slope,
                 out_dtype, compute_dtype):
    rows, t_in = x2d.shape
    t_out = op.shape[1]
    assert op.shape[0] == t_in and t_out == t_in * scale_prod

    # Band-structure sanity check (operator is provably banded; eager-only, cheap).
    base = jnp.arange(t_out) // scale_prod
    outside = jnp.abs(jnp.arange(t_in)[:, None] - base[None, :]) > radius
    assert not bool(jnp.any(jnp.where(outside, op, 0.0) != 0.0)), \
        "operator is not banded with the assumed radius"

    in_bytes = jnp.dtype(compute_dtype).itemsize
    out_bytes = jnp.dtype(out_dtype).itemsize

    t_tile = _select_time_tile(t_in, scale_prod, radius, in_bytes, out_bytes)
    nj = t_in // t_tile
    n_tile = t_tile * scale_prod
    band_w = _round_up(t_tile + 2 * radius, 8)

    rows_pad = max(8, _round_up(rows, 8))
    row_block = _select_row_block(rows_pad, nj, band_w, n_tile, in_bytes, out_bytes)
    nr = rows_pad // row_block

    # Pad rows (sublane alignment) and time (band halo); materialize the overlapping input
    # windows and the operator band slabs the kernel consumes.
    left = radius
    right = band_w - t_tile - radius              # = radius + sublane padding
    xp = jnp.pad(x2d.astype(compute_dtype), ((0, rows_pad - rows), (left, right)))
    opp = jnp.pad(op, ((left, right), (0, 0))).astype(compute_dtype)

    win = (jnp.arange(nj) * t_tile)[:, None] + jnp.arange(band_w)[None, :]    # (nj, band_w)
    x_win = jnp.swapaxes(xp[:, win], 0, 1)                                    # (nj, rows_pad, band_w)
    cols = (jnp.arange(nj) * n_tile)[:, None] + jnp.arange(n_tile)[None, :]   # (nj, n_tile)
    slabs = opp[win[:, :, None], cols[:, None, :]]                            # (nj, band_w, n_tile)

    step_bytes = 2 * (row_block * band_w * in_bytes + band_w * n_tile * in_bytes
                      + row_block * n_tile * out_bytes)
    vmem_limit = int(min(max(step_bytes * 3 // 2 + (4 << 20), 32 << 20), 48 << 20))

    kernel = functools.partial(_banded_matmul_kernel,
                               activation=activation, negative_slope=negative_slope)
    out = pl.pallas_call(
        kernel,
        out_shape=jax.ShapeDtypeStruct((rows_pad, t_out), out_dtype),
        grid_spec=pltpu.PrefetchScalarGridSpec(
            num_scalar_prefetch=0,
            grid=(nj, nr),   # outer: output-time tile (slab DMA reused), inner: row tile
            in_specs=[
                pl.BlockSpec((1, row_block, band_w), lambda j, r: (j, r, 0)),
                pl.BlockSpec((1, band_w, n_tile), lambda j, r: (j, 0, 0)),
            ],
            out_specs=pl.BlockSpec((row_block, n_tile), lambda j, r: (r, j)),
        ),
        compiler_params=pltpu.CompilerParams(
            dimension_semantics=("parallel", "parallel"),
            vmem_limit_bytes=vmem_limit),
    )(x_win, slabs)
    return out[:rows]


# ---------------------------------------------------------------------------
# Public entry point
# ---------------------------------------------------------------------------
def upsample_network_pallas(c, upsample_scales, conv_weights, *,
                            nonlinear_activation=None,
                            nonlinear_activation_params=None,
                            interpolate_mode="nearest",
                            freq_axis_kernel_size=1,
                            use_causal_conv=False,
                            compute_dtype=jnp.float32):
    """c: (B, C, T).  conv_weights[i]: PyTorch Conv2d weight (1, 1, 1, 2*scale_i+1).

    Returns (B, C, T * prod(upsample_scales)) in c.dtype."""
    if interpolate_mode != "nearest":
        raise NotImplementedError("only nearest interpolation")  # TODO(synk): other interpolate modes
    if freq_axis_kernel_size != 1:
        raise NotImplementedError("freq_axis_kernel_size must be 1")  # TODO(synk): freq-axis mixing
    if use_causal_conv:
        raise NotImplementedError("use_causal_conv not supported")  # TODO(synk): causal variant
    if nonlinear_activation not in (None, "LeakyReLU", "ReLU"):
        raise NotImplementedError(f"activation {nonlinear_activation}")
    nonlinear_activation_params = nonlinear_activation_params or {}
    negative_slope = float(nonlinear_activation_params.get("negative_slope", 0.01))

    B, C, T = c.shape
    scales = [int(s) for s in upsample_scales]
    out_dtype = c.dtype
    rows = B * C
    x2d = c.reshape(rows, T)

    # Per-layer band forms (zero padding + conv taps baked in; no dense (t_out,t_out) matrices).
    bands = []
    t_cur = T
    for s, w in zip(scales, conv_weights):
        taps = jnp.asarray(w, jnp.float32).reshape(-1)
        assert taps.shape[0] == 2 * s + 1, "conv kernel must have 2*scale+1 time taps"
        t_cur *= s
        bands.append(_layer_band(t_cur, s, taps))
    t_final = t_cur

    if nonlinear_activation is None:
        # Default path: whole network is linear -> fold into ONE banded operator
        # (shape (T, T_final), band half-width = #layers) and run a single pass.
        fused = jnp.eye(T, dtype=jnp.float32)
        for s, band in zip(scales, bands):
            fused = _compose_with_band(fused, band, s)
        out2d = _banded_pass(x2d, fused, t_final // T, max(1, len(scales)),
                             activation=None, negative_slope=negative_slope,
                             out_dtype=out_dtype, compute_dtype=compute_dtype)
    else:
        # Activation path: one banded pass per layer (radius 1), activation fused in-kernel.
        # TODO(synk): for very long sequences build the per-layer slabs straight from the band
        # form instead of the dense (t_in, t_out) per-layer operator used here.
        h = x2d
        t_cur = T
        for li, (s, band) in enumerate(zip(scales, bands)):
            op = _compose_with_band(jnp.eye(t_cur, dtype=jnp.float32), band, s)
            t_cur *= s
            last = li == len(scales) - 1
            h = _banded_pass(h, op, s, 1,
                             activation=nonlinear_activation,
                             negative_slope=negative_slope,
                             out_dtype=out_dtype if last else compute_dtype,
                             compute_dtype=compute_dtype)
        out2d = h

    return out2d.reshape(B, C, t_final)


# ---------------------------------------------------------------------------
# Pure-JAX reference mirroring the PyTorch module
# ---------------------------------------------------------------------------
def upsample_network_ref(c, upsample_scales, conv_weights, *,
                         nonlinear_activation=None, negative_slope=0.01):
    x = c[:, None, :, :]                                   # (B, 1, C, T)
    for s, w in zip(upsample_scales, conv_weights):
        s = int(s)
        x = jnp.repeat(x, s, axis=-1)                      # nearest upsample along T
        x = lax.conv_general_dilated(
            x, jnp.asarray(w, jnp.float32),
            window_strides=(1, 1),
            padding=((0, 0), (s, s)),                      # zero pad along time
            dimension_numbers=("NCHW", "OIHW", "NCHW"))
        if nonlinear_activation == "LeakyReLU":
            x = jnp.where(x >= 0, x, negative_slope * x)
        elif nonlinear_activation == "ReLU":
            x = jnp.maximum(x, 0.0)
    return x[:, 0]                                         # (B, C, T')


if __name__ == "__main__":
    B, C, T = 2, 32, 16
    upsample_scales = [2, 4]          # T_final = 16 * 2 * 4 = 128 (lane-dense output)

    key = jax.random.PRNGKey(0)
    keys = jax.random.split(key, 1 + len(upsample_scales))
    c = jax.random.normal(keys[0], (B, C, T), jnp.float32)

    conv_weights = []
    for s, kw in zip(upsample_scales, keys[1:]):
        # PyTorch Conv2d weight layout: (out=1, in=1, freq_k=1, 2*scale+1), bias=False.
        conv_weights.append(0.3 * jax.random.normal(kw, (1, 1, 1, 2 * s + 1), jnp.float32))

    t_final = T * math.prod(upsample_scales)
    ref = upsample_network_ref(c, upsample_scales, conv_weights)

    # 1) Default config (no activation), f32 operands — tight tolerance.
    out = jax.block_until_ready(upsample_network_pallas(c, upsample_scales, conv_weights))
    assert out.shape == (B, C, t_final), out.shape
    assert jnp.allclose(out, ref, atol=1e-4, rtol=1e-4), "f32 fused path mismatch"

    # 2) bf16 operands with f32 MXU accumulation — looser tolerance.
    out_bf16 = jax.block_until_ready(
        upsample_network_pallas(c, upsample_scales, conv_weights,
                                compute_dtype=jnp.bfloat16))
    assert jnp.allclose(out_bf16, ref, atol=5e-2, rtol=5e-2), "bf16 path mismatch"

    # 3) LeakyReLU path (per-layer banded passes, activation fused in-kernel).
    out_act = jax.block_until_ready(
        upsample_network_pallas(c, upsample_scales, conv_weights,
                                nonlinear_activation="LeakyReLU",
                                nonlinear_activation_params={"negative_slope": 0.2}))
    ref_act = upsample_network_ref(c, upsample_scales, conv_weights,
                                   nonlinear_activation="LeakyReLU", negative_slope=0.2)
    assert jnp.allclose(out_act, ref_act, atol=1e-4, rtol=1e-4), "activation path mismatch"

    print("KERNEL_OK")
</pallas_src>

<mosaic_0001>
module attributes {stable_mosaic.version = 11 : i64} {
  func.func @_banded_matmul_kernel(%arg0: i32, %arg1: i32, %arg2: memref<1x32x24xf32, #tpu.memory_space<vmem>>, %arg3: memref<1x24x128xf32, #tpu.memory_space<vmem>>, %arg4: memref<32x128xf32, #tpu.memory_space<vmem>>) attributes {dimension_semantics = [#tpu.dimension_semantics<parallel>, #tpu.dimension_semantics<parallel>], iteration_bounds = array<i64: 1, 2>, scalar_prefetch = 0 : i64, scratch_operands = 0 : i64, tpu.core_type = #tpu.core_type<tc>, window_params = [{transform_indices = @transform_0, window_bounds = array<i64: 1, 32, 24>}, {transform_indices = @transform_1, window_bounds = array<i64: 1, 24, 128>}, {transform_indices = @transform_2, window_bounds = array<i64: 32, 128>}]} {
    %c0 = arith.constant 0 : index
    %c0_0 = arith.constant 0 : index
    %c0_1 = arith.constant 0 : index
    %0 = vector.load %arg2[%c0, %c0_0, %c0_1] : memref<1x32x24xf32, #tpu.memory_space<vmem>>, vector<1x32x24xf32>
    %1 = vector.shape_cast %0 : vector<1x32x24xf32> to vector<32x24xf32>
    %c0_2 = arith.constant 0 : index
    %c0_3 = arith.constant 0 : index
    %c0_4 = arith.constant 0 : index
    %2 = vector.load %arg3[%c0_2, %c0_3, %c0_4] : memref<1x24x128xf32, #tpu.memory_space<vmem>>, vector<1x24x128xf32>
    %3 = vector.shape_cast %2 : vector<1x24x128xf32> to vector<24x128xf32>
    %cst = arith.constant dense<0.000000e+00> : vector<32x128xf32>
    %4 = tpu.matmul %1, %3, %cst {dimension_numbers = #tpu.dot_dimension_numbers<[1], [0], [0], [1], [0, 0, 1, 1], [], []>} : vector<32x24xf32>, vector<24x128xf32>, vector<32x128xf32> -> vector<32x128xf32>
    %c0_5 = arith.constant 0 : index
    %c0_6 = arith.constant 0 : index
    %5 = vector.load %arg4[%c0_5, %c0_6] : memref<32x128xf32, #tpu.memory_space<vmem>>, vector<32x128xf32>
    tpu.vector_store %arg4[%c0_5, %c0_6], %4 {strides = array<i32>} : memref<32x128xf32, #tpu.memory_space<vmem>>, vector<32x128xf32>,
    return
  }
  func.func @transform_0(%arg0: i32, %arg1: i32) -> (i32, i32, i32) {
    %c0_i32 = arith.constant 0 : i32
    %c0_i32_0 = arith.constant 0 : i32
    return %arg0, %arg1, %c0_i32 : i32, i32, i32
  }
  func.func @transform_1(%arg0: i32, %arg1: i32) -> (i32, i32, i32) {
    %c0_i32 = arith.constant 0 : i32
    %c0_i32_0 = arith.constant 0 : i32
    %c0_i32_1 = arith.constant 0 : i32
    return %arg0, %c0_i32, %c0_i32_0 : i32, i32, i32
  }
  func.func @transform_2(%arg0: i32, %arg1: i32) -> (i32, i32) {
    %c0_i32 = arith.constant 0 : i32
    return %arg1, %arg0 : i32, i32
  }
}

</mosaic_0001>

<llo_original>
// kernel: tpu_custom_call.1
$region0: #{tpu_custom_call.1}
  #allocation0 [shape = 'u32[]', space=smem, size = 0x4, offset = 0x4, fixed_abs, tag = 'smem constant byte address 0x4 - core index']
  #allocation1 [shape = 'u32[144,128]{1,0:T(1,128)}', space=vmem, size = 0x12000, scoped, tag = 'internal scratch']
  %s0 = inlined_call_operand.vmem [shape: f32[1,64,24], index: 0, kind: input, shape index: {}]
  %s1 = inlined_call_operand.vmem [shape: f32[1,24,128], index: 1, kind: input, shape index: {}]
  %s2 = inlined_call_operand.hbm [shape: f32[64,128], index: 2, kind: output, shape index: {}]
  %s3 = sld [smem:[#allocation0]]
  $region41: #{tpu_custom_call.1} parent=0
    _
  %s5 = ssub.s32 1, %s3
  %s6 = scalar_select 0, %s5, %s3
  $region1: #{tpu_custom_call.1} parent=0
    #allocation2 [shape = 'u8[32768]{0}', space=vmem, size = 0x8000, scoped, tag = 'output window, operand 0']
    #allocation3 [shape = 's32[2]{0}', space=sflag, size = 0x8, scoped, tag = 'scoped memory for tpu_custom_call.1']
    %7 = vsyncpa [#allocation3], 0
    %s8 = scalar_lea.sflag [#allocation3], 1
    %9 = vsyncpa %s8, 0
    loop: start=0, step=1, limit=4
    $region2: #{tpu_custom_call.1} parent=1 // loop_pre_header
      _
    $region3: #{tpu_custom_call.1} parent=1 // loop_header
      %s11 = sphi 0, %s15
      %p12 = scmp.ge.s32.totalorder %s11, 4
      %s18 = sphi 0, %s30
      %s19 = sphi 0, %s26
      %s20 = sphi 0, %s18
      %s21 = sphi 0, %s19
      %s22 = sphi 0, %s20
      %s23 = sphi 0, %s21
      %s35 = sphi 0, %s37
      %s38 = sphi 0, %s35
      %s39 = sphi 0, %s38
      %s55 = sphi 0, %s39
      %s61 = sphi 0, %s63
      %s64 = sphi 0, %s61
      %s65 = sphi 0, %s64
      %s81 = sphi 0, %s65
      %s89 = sphi 0, %s91
      %s92 = sphi 0, %s89
      %s93 = sphi 0, %s92
      %s109 = sphi 0, %s93
    $region4: #{tpu_custom_call.1} parent=1 // loop_header_branch
      %14 = sbr.rel (%p12) target = $region8
    $region5: #{tpu_custom_call.1} parent=1 // loop_body
      %s16 = ssub.s32 %s11, 1
      %s17 = ssub.s32 %s11, 2
      %s24 = sadd.s32 1, %s19
      %p25 = scmp.ge.s32.totalorder %s24, 2
      %s26 = scalar_select %p25, 0, %s24
      %s27 = sadd.s32 1, %s18
      %s28 = scalar_select %p25, %s27, %s18
      %p29 = scmp.ge.s32.totalorder %s28, 1
      %s30 = scalar_select %p29, 0, %s28
      %s31 = ssub.s32 %s18, %s30
      %s32 = ssub.s32 %s19, %s26
      %s33 = sor.u32 %s31, %s32
      %p34 = scmp.eq.s32.totalorder %s33, 0
      %s36 = sadd.s32 %s35, 1
      %s37 = scalar_select %p34, %s35, %s36
      %p40 = pneg %p34
      %p41 = scmp.eq.s32.totalorder %s11, 1
      %p42 = por %p40, %p41
      %p43 = scmp.ne.s32.totalorder %s35, %s38
      %p44 = scmp.eq.s32.totalorder %s11, 0
      %p45 = por %p43, %p44
      %p46 = scmp.ne.s32.totalorder %s35, %s38
      %p47 = scmp.eq.s32.totalorder %s16, 1
      %p48 = por %p46, %p47
      %p49 = scmp.ne.s32.totalorder %s38, %s39
      %p50 = scmp.eq.s32.totalorder %s16, 0
      %p51 = por %p49, %p50
      %p52 = scmp.ne.s32.totalorder %s38, %s39
      %p53 = scmp.eq.s32.totalorder %s17, 1
      %p54 = por %p52, %p53
      %p56 = scmp.ne.s32.totalorder %s39, %s55
      %p57 = scmp.eq.s32.totalorder %s17, 0
      %p58 = por %p56, %p57
      %s59 = ssub.s32 %s18, %s30
      %p60 = scmp.eq.s32.totalorder %s59, 0
      %s62 = sadd.s32 %s61, 1
      %s63 = scalar_select %p60, %s61, %s62
      %p66 = pneg %p60
      %p67 = scmp.eq.s32.totalorder %s11, 1
      %p68 = por %p66, %p67
      %p69 = scmp.ne.s32.totalorder %s61, %s64
      %p70 = scmp.eq.s32.totalorder %s11, 0
      %p71 = por %p69, %p70
      %p72 = scmp.ne.s32.totalorder %s61, %s64
      %p73 = scmp.eq.s32.totalorder %s16, 1
      %p74 = por %p72, %p73
      %p75 = scmp.ne.s32.totalorder %s64, %s65
      %p76 = scmp.eq.s32.totalorder %s16, 0
      %p77 = por %p75, %p76
      %p78 = scmp.ne.s32.totalorder %s64, %s65
      %p79 = scmp.eq.s32.totalorder %s17, 1
      %p80 = por %p78, %p79
      %p82 = scmp.ne.s32.totalorder %s65, %s81
      %p83 = scmp.eq.s32.totalorder %s17, 0
      %p84 = por %p82, %p83
      %s85 = ssub.s32 %s19, %s26
      %s86 = ssub.s32 %s18, %s30
      %s87 = sor.u32 %s85, %s86
      %p88 = scmp.eq.s32.totalorder %s87, 0
      %s90 = sadd.s32 %s89, 1
      %s91 = scalar_select %p88, %s89, %s90
      %p94 = pneg %p88
      %p95 = scmp.eq.s32.totalorder %s11, 1
      %p96 = por %p94, %p95
      %p97 = scmp.ne.s32.totalorder %s89, %s92
      %p98 = scmp.eq.s32.totalorder %s11, 0
      %p99 = por %p97, %p98
      %p100 = scmp.ne.s32.totalorder %s89, %s92
      %p101 = scmp.eq.s32.totalorder %s16, 1
      %p102 = por %p100, %p101
      %p103 = scmp.ne.s32.totalorder %s92, %s93
      %p104 = scmp.eq.s32.totalorder %s16, 0
      %p105 = por %p103, %p104
      %p106 = scmp.ne.s32.totalorder %s92, %s93
      %p107 = scmp.eq.s32.totalorder %s17, 1
      %p108 = por %p106, %p107
      %p110 = scmp.ne.s32.totalorder %s93, %s109
      %p111 = scmp.eq.s32.totalorder %s17, 0
      %p112 = por %p110, %p111
      %p113 = scmp.le.s32.totalorder 1, %s11
      %p114 = scmp.lt.s32.totalorder %s11, 3
      %p115 = pnand %p113, %p114
      %p116 = pneg %p115
      // Predicated region
      $region9: #{tpu_custom_call.1} parent=5 // pred_check
        _
      $region10: #{tpu_custom_call.1} parent=5 // pred_check_branch
        %118 = sbr.rel (%p115) target = $region12
      $region11: #{tpu_custom_call.1} parent=5 // pred_region
        %s119 = ssub.s32 %s11, 1
        // Predicated region
        $region13: #{tpu_custom_call.1} parent=11 // pred_check
          %p120 = pneg %p77
        $region14: #{tpu_custom_call.1} parent=11 // pred_check_branch
          %122 = sbr.rel (%p120) target = $region16
        $region15: #{tpu_custom_call.1} parent=11 // pred_region
          %p123 = scmp.lt.s32.totalorder %s20, 0
          %s124 = scalar_select %p123, %s20, 0
          %s125 = smul.addr %s124, 3
          %s126 = smul.addr %s125, 8
          %s127 = scalar_lea.vmem %s1, %s126
        $region16: #{tpu_custom_call.1} parent=11 // pred_fallthru
          _
      $region12: #{tpu_custom_call.1} parent=5 // pred_fallthru
        _
      %p128 = scmp.lt.s32.totalorder %s11, 2
      // Predicated region
      $region17: #{tpu_custom_call.1} parent=5 // pred_check
        %p129 = pneg %p128
      $region18: #{tpu_custom_call.1} parent=5 // pred_check_branch
        %131 = sbr.rel (%p129) target = $region20
      $region19: #{tpu_custom_call.1} parent=5 // pred_region
        // Predicated region
        $region21: #{tpu_custom_call.1} parent=19 // pred_check
          %p132 = pneg %p45
        $region22: #{tpu_custom_call.1} parent=19 // pred_check_branch
          %134 = sbr.rel (%p132) target = $region24
        $region23: #{tpu_custom_call.1} parent=19 // pred_region
          %s135 = smul.u32 4, %s19
          %p136 = scmp.lt.s32.totalorder %s18, 0
          %s137 = scalar_select %p136, %s18, 0
          %p138 = scmp.lt.s32.totalorder %s135, 7
          %s139 = scalar_select %p138, %s135, 7
          %s140 = smul.addr %s137, 8
          %s141 = sadd.s32 %s139, %s140
          %s142 = smul.addr %s141, 8
          %s143 = scalar_lea.vmem %s0, %s142
          %s144 = smul.u32 4, %s19
        $region24: #{tpu_custom_call.1} parent=19 // pred_fallthru
          _
      $region20: #{tpu_custom_call.1} parent=5 // pred_fallthru
        _
      %p145 = scmp.le.s32.totalorder 1, %s11
      %p146 = scmp.lt.s32.totalorder %s11, 3
      %p147 = pnand %p145, %p146
      %p148 = pneg %p147
      // Predicated region
      $region25: #{tpu_custom_call.1} parent=5 // pred_check
        _
      $region26: #{tpu_custom_call.1} parent=5 // pred_check_branch
        %150 = sbr.rel (%p147) target = $region28
      $region27: #{tpu_custom_call.1} parent=5 // pred_region
        %s151 = ssub.s32 %s11, 1
        %s152 = smul.u32 4, %s21
        %p153 = scmp.lt.s32.totalorder %s20, 0
        %s154 = scalar_select %p153, %s20, 0
        %p155 = scmp.lt.s32.totalorder %s152, 7
        %s156 = scalar_select %p155, %s152, 7
        %s157 = smul.addr %s154, 8
        %s158 = sadd.s32 %s156, %s157
        %s159 = smul.addr %s158, 8
        %s160 = scalar_lea.vmem %s0, %s159
        %p161 = pneg %p51
        %p162 = pneg %p48
        %p163 = scmp.lt.s32.totalorder %s20, 0
        %s164 = scalar_select %p163, %s20, 0
        %s165 = smul.addr %s164, 3
        %s166 = smul.addr %s165, 8
        %s167 = scalar_lea.vmem %s1, %s166
        %p168 = pneg %p77
        %p169 = pneg %p74
        %p170 = pneg %p105
        %p171 = pneg %p102
        %s172 = sand.u32 %s92, 1
        %s173 = scalar_lea.sflag [#allocation3], %s172
        %s174 = sand.u32 %s92, 1
        %s175 = smul.addr %s174, 32
        %s176 = scalar_lea.vmem [#allocation2], %s175
        %s177 = smul.u32 4, %s21
        %p178 = scmp.lt.s32.totalorder %s20, 0
        %s179 = scalar_select %p178, %s20, 0
        %p180 = scmp.lt.s32.totalorder %s177, 7
        %s181 = scalar_select %p180, %s177, 7
        %s182 = smul.addr %s179, 8
        %s183 = sadd.s32 %s181, %s182
        %s184 = smul.addr %s183, 8
        %s185 = scalar_lea.vmem %s0, %s184
        %s186 = smul.u32 4, %s21
        %p187 = scmp.lt.s32.totalorder %s20, 0
        %s188 = scalar_select %p187, %s20, 0
        %s189 = smul.addr %s188, 3
        %s190 = smul.addr %s189, 8
        %s191 = scalar_lea.vmem %s1, %s190
        %s192 = smul.u32 4, %s21
        %v193 = vld [vmem:[%s185] sm:$0xff]
        %v194 = vld [vmem:[%s185 + $0x8] sm:$0xff]
        %v195 = vld [vmem:[%s185 + $0x10] sm:$0xff]
        %v196 = vld [vmem:[%s185 + $0x18] sm:$0xff]
        %v197 = vld [vmem:[%s191] sm:$0xff]
        %v198 = vld [vmem:[%s191 + $0x8] sm:$0xff]
        %v199 = vld [vmem:[%s191 + $0x10] sm:$0xff]
        %vm200 = vcmask 195584
        %v202 = vsel %vm200, %v193, 0
        %v205 = vsel %vm200, %v194, 0
        %v208 = vsel %vm200, %v195, 0
        %v211 = vsel %vm200, %v196, 0
        %213 = vmatprep.subr.mxu0 0.0
        %214 = vmatpush1.msra.mxu0 0.0
        %215 = vmatprep.subr.mxu0 0.0
        %216 = vmatpush1.msra.mxu0 0.0
        %217 = vmatprep.subr.mxu0 0.0
        %218 = vmatpush1.msra.mxu0 0.0
        %219 = vmatprep.subr.mxu0 0.0
        %220 = vmatpush1.msra.mxu0 0.0
        %221 = vmatprep.subr.mxu0 0.0
        %222 = vmatpush1.msra.mxu0 0.0
        %223 = vmatprep.subr.mxu0 0.0
        %224 = vmatpush1.msra.mxu0 0.0
        %225 = vmatprep.subr.mxu0 0.0
        %226 = vmatpush1.msra.mxu0 0.0
        %227 = vmatprep.subr.mxu0 0.0
        %228 = vmatpush1.msra.mxu0 0.0
        %229 = vmatprep.subr.mxu0 0.0
        %230 = vmatpush1.msra.mxu0 0.0
        %231 = vmatprep.subr.mxu0 0.0
        %232 = vmatpush1.msra.mxu0 0.0
        %233 = vmatprep.subr.mxu0 0.0
        %234 = vmatpush1.msra.mxu0 0.0
        %235 = vmatprep.subr.mxu0 0.0
        %236 = vmatpush1.msra.mxu0 0.0
        %237 = vmatprep.subr.mxu0 0.0
        %238 = vmatpush1.msra.mxu0 0.0
        %239 = vmatprep.subr.mxu0 0.0
        %240 = vmatpush1.msra.mxu0 %v199
        %241 = vmatprep.subr.mxu0 0.0
        %242 = vmatpush1.msra.mxu0 %v198
        %243 = vmatprep.subr.mxu0 0.0
        %244 = vmatpush1.msra.mxu0 %v197
        %245 = vmatprep.subr.mxu0 0.0
        %246 = vmatpush2.msra.mxu0 0.0
        %247 = vmatprep.subr.mxu0 0.0
        %248 = vmatpush2.msra.mxu0 0.0
        %249 = vmatprep.subr.mxu0 0.0
        %250 = vmatpush2.msra.mxu0 0.0
        %251 = vmatprep.subr.mxu0 0.0
        %252 = vmatpush2.msra.mxu0 0.0
        %253 = vmatprep.subr.mxu0 0.0
        %254 = vmatpush2.msra.mxu0 0.0
        %255 = vmatprep.subr.mxu0 0.0
        %256 = vmatpush2.msra.mxu0 0.0
        %257 = vmatprep.subr.mxu0 0.0
        %258 = vmatpush2.msra.mxu0 0.0
        %259 = vmatprep.subr.mxu0 0.0
        %260 = vmatpush2.msra.mxu0 0.0
        %261 = vmatprep.subr.mxu0 0.0
        %262 = vmatpush2.msra.mxu0 0.0
        %263 = vmatprep.subr.mxu0 0.0
        %264 = vmatpush2.msra.mxu0 0.0
        %265 = vmatprep.subr.mxu0 0.0
        %266 = vmatpush2.msra.mxu0 0.0
        %267 = vmatprep.subr.mxu0 0.0
        %268 = vmatpush2.msra.mxu0 0.0
        %269 = vmatprep.subr.mxu0 0.0
        %270 = vmatpush2.msra.mxu0 0.0
        %271 = vmatprep.subr.mxu0 0.0
        %272 = vmatpush2.msra.mxu0 0.0
        %273 = vmatprep.subr.mxu0 0.0
        %274 = vmatpush2.msra.mxu0 0.0
        %275 = vmatprep.subr.mxu0 0.0
        %276 = vmatpush2.msra.mxu0 0.0
        %277 = vmatprep.mubr.f32.mxu0 0.0
        %278 = vmatmul.mubr.f32.gmra.mxu0 %v202
        %v279 = vpop.f32.mrf.mxu0
        %v280 = vadd.f32 0.0, %v279
        %v281 = vpop.f32.mrf.mxu0
        %282 = vmatprep.mubr.f32.mxu0 0.0
        %283 = vmatmul.mubr.f32.gmra.mxu0 %v205
        %v284 = vpop.f32.mrf.mxu0
        %v285 = vadd.f32 0.0, %v284
        %v286 = vpop.f32.mrf.mxu0
        %287 = vmatprep.mubr.f32.mxu0 0.0
        %288 = vmatmul.mubr.f32.gmra.mxu0 %v208
        %v289 = vpop.f32.mrf.mxu0
        %v290 = vadd.f32 0.0, %v289
        %v291 = vpop.f32.mrf.mxu0
        %292 = vmatprep.mubr.f32.mxu0 0.0
        %293 = vmatmul.mubr.f32.gmra.mxu0 %v211
        %v294 = vpop.f32.mrf.mxu0
        %v295 = vadd.f32 0.0, %v294
        %v296 = vpop.f32.mrf.mxu0
        %297 = vdwg.mxu0
        %298 = vst [vmem:[%s176] sm:$0xff] %v280
        %299 = vst [vmem:[%s176 + $0x8] sm:$0xff] %v285
        %300 = vst [vmem:[%s176 + $0x10] sm:$0xff] %v290
        %301 = vst [vmem:[%s176 + $0x18] sm:$0xff] %v295
        %s302 = sand.u32 %s92, 1
        %s303 = scalar_lea.sflag [#allocation3], %s302
        %s304 = sand.u32 %s92, 1
        %s305 = smul.addr %s304, 32
        %s306 = scalar_lea.vmem [#allocation2], %s305
        // Predicated region
        $region29: #{tpu_custom_call.1} parent=27 // pred_check
          %p307 = pneg %p102
        $region30: #{tpu_custom_call.1} parent=27 // pred_check_branch
          %309 = sbr.rel (%p307) target = $region32
        $region31: #{tpu_custom_call.1} parent=27 // pred_region
          %s310 = smul.u32 4, %s21
          %s312 = ssub.s32 512, 512
          %313 = vsyncadd %s303, %s312
          %s314 = sadd.s32 %s20, %s310
          %s315 = smul.addr %s314, 128
          %s316 = scalar_lea.hbm %s2, %s315
          %s317 = sshll.u32 %s306, 4
          %s318 = int_to_ptr.vmem [resolvable:$true] %s317
          %323 = dma.vmem_to_hbm [thread:$0]  %s318, 512, %s316, %s303, 128, 128, 8
        $region32: #{tpu_custom_call.1} parent=27 // pred_fallthru
          _
      $region28: #{tpu_custom_call.1} parent=5 // pred_fallthru
        _
      %p324 = scmp.le.s32.totalorder 2, %s11
      // Predicated region
      $region33: #{tpu_custom_call.1} parent=5 // pred_check
        %p325 = pneg %p324
      $region34: #{tpu_custom_call.1} parent=5 // pred_check_branch
        %327 = sbr.rel (%p325) target = $region36
      $region35: #{tpu_custom_call.1} parent=5 // pred_region
        %s328 = ssub.s32 %s11, 2
        // Predicated region
        $region37: #{tpu_custom_call.1} parent=35 // pred_check
          %p329 = pneg %p108
        $region38: #{tpu_custom_call.1} parent=35 // pred_check_branch
          %331 = sbr.rel (%p329) target = $region40
        $region39: #{tpu_custom_call.1} parent=35 // pred_region
          %s332 = sand.u32 %s93, 1
          %s333 = scalar_lea.sflag [#allocation3], %s332
          %s334 = sand.u32 %s93, 1
          %s335 = smul.addr %s334, 32
          %s336 = scalar_lea.vmem [#allocation2], %s335
          %337 = dma.done %s333, 512
        $region40: #{tpu_custom_call.1} parent=35 // pred_fallthru
          _
      $region36: #{tpu_custom_call.1} parent=5 // pred_fallthru
        _
    $region6: #{tpu_custom_call.1} parent=1 // loop_footer
      %s15 = sadd.s32 1, %s11
    $region7: #{tpu_custom_call.1} parent=1 // loop_footer_branch
      %10 = sbr.rel target = $region3
    $region8: #{tpu_custom_call.1} parent=1 // loop_exit
      _
    %338 = vsyncpa [#allocation3], 1
    %s339 = scalar_lea.sflag [#allocation3], 1
    %340 = vsyncpa %s339, 1

</llo_original>
